<compile_context>
chip_gen: v5e
topology: v5e:2x2
jax: 0.10.0
libtpu: 0.0.40
codegen_flags: <defaults>
</compile_context>

<pallas_src>
import jax
import jax.numpy as jnp
from jax.experimental import pallas as pl
from jax.experimental.pallas import tpu as pltpu


def _channel_norm_kernel(x_ref, o_ref):
    """Row-wise, numerically stable softmax over one (tile_rows, HW) tile."""
    x = x_ref[...].astype(jnp.float32)
    x_max = jnp.max(x, axis=-1, keepdims=True)
    e = jnp.exp(x - x_max)
    denom = jnp.sum(e, axis=-1, keepdims=True)
    # Exact per-row reciprocal (only tile_rows elements), then broadcast multiply.
    o_ref[...] = (e * (1.0 / denom)).astype(o_ref.dtype)


def _round_up(x, m):
    return (x + m - 1) // m * m


def channel_norm(featmap):
    """Pallas equivalent of ChannelNorm.forward."""
    n, c, h, w = featmap.shape
    rows, hw = n * c, h * w
    dtype = featmap.dtype
    itemsize = jnp.dtype(dtype).itemsize

    # Sublane granularity: 8 rows for 32-bit, 16 for 16-bit, 32 for 8-bit dtypes.
    sub = max(8, 32 // itemsize)

    # Tile sizing from the VMEM budget: target ~2 MiB per input tile (the kernel
    # is HBM-bandwidth bound; big tiles amortize the ~0.35 us/step overhead),
    # clamped so small inputs stay a single tile.
    target_tile_bytes = 2 << 20
    rows_min = _round_up(rows, sub)
    tile_rows = max(sub, (target_tile_bytes // (hw * itemsize)) // sub * sub)
    tile_rows = min(tile_rows, rows_min)

    rows_p = _round_up(rows, tile_rows)
    grid = (rows_p // tile_rows,)

    x2d = featmap.reshape(rows, hw)
    if rows_p != rows:
        # Zero-pad rows up to a tile multiple; padded rows softmax to a uniform
        # distribution and are sliced off below.
        x2d = jnp.pad(x2d, ((0, rows_p - rows), (0, 0)))

    # VMEM budget: input + output, double-buffered, plus f32 temporaries inside
    # the body, plus headroom.  Cap well under v7x's 64 MiB per-TC VMEM.
    tile_bytes = tile_rows * hw * itemsize
    tile_bytes_f32 = tile_rows * hw * 4
    vmem_needed = 4 * tile_bytes + 3 * tile_bytes_f32 + (4 << 20)
    vmem_limit = int(min(max(vmem_needed, 16 << 20), 48 << 20))

    out2d = pl.pallas_call(
        _channel_norm_kernel,
        out_shape=jax.ShapeDtypeStruct((rows_p, hw), dtype),
        grid=grid,
        in_specs=[pl.BlockSpec((tile_rows, hw), lambda i: (i, 0))],
        out_specs=pl.BlockSpec((tile_rows, hw), lambda i: (i, 0)),
        compiler_params=pltpu.CompilerParams(
            dimension_semantics=("parallel",),  # independent row tiles
            vmem_limit_bytes=vmem_limit,
        ),
    )(x2d)

    # TODO(synk): add a jax.custom_vjp (backward kernel) if gradients through
    # channel_norm are ever needed; pallas_call is not differentiable by default.
    return out2d[:rows].reshape(n, c, hw)


# ---- pure-JAX reference for a correctness sanity check -----------------------
def _channel_norm_ref(featmap):
    n, c, h, w = featmap.shape
    f32 = featmap.reshape(n, c, -1).astype(jnp.float32)
    return jax.nn.softmax(f32, axis=-1).astype(featmap.dtype)


if __name__ == "__main__":
    key = jax.random.PRNGKey(0)
    k1, k2 = jax.random.split(key, 2)

    # Shape implied by the module's forward: (N, C, H, W) = (2, 4, 16, 16).
    x1 = jax.random.normal(k1, (2, 4, 16, 16), dtype=jnp.float32)
    out1 = jax.block_until_ready(channel_norm(x1))
    ref1 = _channel_norm_ref(x1)
    assert out1.shape == (2, 4, 256), out1.shape
    assert jnp.allclose(out1, ref1, rtol=1e-5, atol=1e-6), float(
        jnp.max(jnp.abs(out1 - ref1))
    )

    # Ragged row count (N*C = 6, not a multiple of 8): exercises the padding path.
    x2 = jax.random.normal(k2, (2, 3, 16, 16), dtype=jnp.float32)
    out2 = jax.block_until_ready(channel_norm(x2))
    ref2 = _channel_norm_ref(x2)
    assert out2.shape == (2, 3, 256), out2.shape
    assert jnp.allclose(out2, ref2, rtol=1e-5, atol=1e-6), float(
        jnp.max(jnp.abs(out2 - ref2))
    )

    print("KERNEL_OK")
</pallas_src>

<mosaic_0001>
module attributes {stable_mosaic.version = 11 : i64} {
  func.func @_channel_norm_kernel(%arg0: i32, %arg1: memref<8x256xf32, #tpu.memory_space<vmem>>, %arg2: memref<8x256xf32, #tpu.memory_space<vmem>>) attributes {dimension_semantics = [#tpu.dimension_semantics<parallel>], iteration_bounds = array<i64: 1>, scalar_prefetch = 0 : i64, scratch_operands = 0 : i64, tpu.core_type = #tpu.core_type<tc>, window_params = [{transform_indices = @transform_0, window_bounds = array<i64: 8, 256>}, {transform_indices = @transform_1, window_bounds = array<i64: 8, 256>}]} {
    %c0 = arith.constant 0 : index
    %c0_0 = arith.constant 0 : index
    %0 = vector.load %arg1[%c0, %c0_0] : memref<8x256xf32, #tpu.memory_space<vmem>>, vector<8x256xf32>
    %cst = arith.constant dense<0xFF800000> : vector<8xf32>
    %1 = vector.multi_reduction <maximumf>, %0, %cst [1] : vector<8x256xf32> to vector<8xf32>
    %2 = vector.shape_cast %1 : vector<8xf32> to vector<8x1xf32>
    %3 = vector.broadcast %2 : vector<8x1xf32> to vector<8x256xf32>
    %4 = arith.subf %0, %3 : vector<8x256xf32>
    %5 = math.exp %4 : vector<8x256xf32>
    %cst_1 = arith.constant dense<0.000000e+00> : vector<8xf32>
    %6 = vector.multi_reduction <add>, %5, %cst_1 [1] : vector<8x256xf32> to vector<8xf32>
    %7 = vector.shape_cast %6 : vector<8xf32> to vector<8x1xf32>
    %cst_2 = arith.constant 1.000000e+00 : f32
    %8 = vector.broadcast %cst_2 : f32 to vector<8x1xf32>
    %9 = arith.divf %8, %7 : vector<8x1xf32>
    %10 = vector.broadcast %9 : vector<8x1xf32> to vector<8x256xf32>
    %11 = arith.mulf %5, %10 : vector<8x256xf32>
    %c0_3 = arith.constant 0 : index
    %c0_4 = arith.constant 0 : index
    %12 = vector.load %arg2[%c0_3, %c0_4] : memref<8x256xf32, #tpu.memory_space<vmem>>, vector<8x256xf32>
    tpu.vector_store %arg2[%c0_3, %c0_4], %11 {strides = array<i32>} : memref<8x256xf32, #tpu.memory_space<vmem>>, vector<8x256xf32>,
    return
  }
  func.func @transform_0(%arg0: i32) -> (i32, i32) {
    %c0_i32 = arith.constant 0 : i32
    %c0_i32_0 = arith.constant 0 : i32
    return %arg0, %c0_i32 : i32, i32
  }
  func.func @transform_1(%arg0: i32) -> (i32, i32) {
    %c0_i32 = arith.constant 0 : i32
    %c0_i32_0 = arith.constant 0 : i32
    return %arg0, %c0_i32 : i32, i32
  }
}

</mosaic_0001>

<llo_original>
// kernel: tpu_custom_call.1
$region0: #{tpu_custom_call.1}
  #allocation0 [shape = 'u32[]', space=smem, size = 0x4, offset = 0x4, fixed_abs, tag = 'smem constant byte address 0x4 - core index']
  #allocation1 [shape = 'u32[72,128]{1,0:T(1,128)}', space=vmem, size = 0x9000, scoped, tag = 'internal scratch']
  %s0 = inlined_call_operand.hbm [shape: f32[8,256], index: 0, kind: input, shape index: {}]
  %s1 = inlined_call_operand.hbm [shape: f32[8,256], index: 1, kind: output, shape index: {}]
  %s2 = sld [smem:[#allocation0]]
  $region18: #{tpu_custom_call.1} parent=0
    _
  %s4 = ssub.s32 1, %s2
  %s5 = scalar_select 0, %s4, %s2
  $region1: #{tpu_custom_call.1} parent=0
    #allocation2 [shape = 'u8[8192]{0}', space=vmem, size = 0x2000, scoped, tag = 'input window, operand 0, single buffered']
    #allocation3 [shape = 's32[1]{0}', space=sflag, size = 0x4, scoped, tag = 'scoped memory for tpu_custom_call.1']
    #allocation4 [shape = 's32[1]{0}', space=sflag, size = 0x4, scoped, tag = 'scoped memory for tpu_custom_call.1']
    #allocation5 [shape = 'u8[8192]{0}', space=vmem, size = 0x2000, scoped, tag = 'output window, operand 0, single buffered']
    %6 = vsyncpa [#allocation3], 0
    %7 = vsyncpa [#allocation4], 0
    // Predicated region
    $region2: #{tpu_custom_call.1} parent=1 // pred_check
      _
    $region3: #{tpu_custom_call.1} parent=1 // pred_check_branch
      %9 = sbr.rel (0) target = $region5
    $region4: #{tpu_custom_call.1} parent=1 // pred_region
      %11 = vsyncadd [#allocation3], 0
      %s13 = sshll.u32 %s0, 4
      %s14 = int_to_ptr.hbm [resolvable:$true] %s13
      %s15 = sshll.u32 [#allocation2], 4
      %s16 = int_to_ptr.vmem [resolvable:$true] %s15
      %18 = dma.hbm_to_vmem [thread:$0]  %s14, 256, %s16, [#allocation3]
    $region5: #{tpu_custom_call.1} parent=1 // pred_fallthru
      _
    // Predicated region
    $region6: #{tpu_custom_call.1} parent=1 // pred_check
      _
    $region7: #{tpu_custom_call.1} parent=1 // pred_check_branch
      %20 = sbr.rel (0) target = $region9
    $region8: #{tpu_custom_call.1} parent=1 // pred_region
      %22 = dma.done [#allocation3], 256
    $region9: #{tpu_custom_call.1} parent=1 // pred_fallthru
      _
    %v23 = vld [vmem:[#allocation2] sm:$0xff]
    %v24 = vld [vmem:[#allocation2 + $0x8] sm:$0xff]
    %v25 = vmax.f32 %v23, %v24
    %26 = vmax.xlane.f32.xlu0 %v25
    %v27 = vpop.xlane.xlu0 %26
    %v28 = vsub.f32 %v23, %v27
    %v29 = vsub.f32 %v24, %v27
    %v30 = vmul.f32 %v28, 1.442695
    %v31 = vpow.pop %v30
    %v32 = vmul.f32 %v29, 1.442695
    %v33 = vpow.pop %v32
    %v34 = vadd.f32 %v31, %v33
    %35 = vadd.xlane.f32.xlu0 %v34
    %v36 = vpop.xlane.xlu0 %35
    %v37 = vrcp.pop %v36
    %v38 = vmul.f32 %v36, %v37
    %v39 = vsub.f32 1.0, %v38
    %v40 = vmul.f32 %v37, %v39
    %v41 = vadd.f32 %v37, %v40
    %vm42 = vweird.f32 %v36
    %vm43 = vweird.f32 %v37
    %vm44 = vmor %vm42, %vm43
    %v45 = vsel %vm44, %v37, %v41
    %v46 = vand.u32 2147483647, %v36
    %vm47 = vcmp.eq.f32.partialorder %v46, 8.507059e+37
    %v48 = vand.u32 %v36, 2147483648
    %v49 = vor.u32 1.1754944e-38, %v48
    %v50 = vsel %vm47, %v49, %v45
    %v51 = vmul.f32 1.0, %v50
    %v52 = vmul.f32 %v31, %v51
    %v53 = vmul.f32 %v33, %v51
    %54 = vst [vmem:[#allocation5] sm:$0xff] %v52
    %55 = vst [vmem:[#allocation5 + $0x8] sm:$0xff] %v53
    // Predicated region
    $region10: #{tpu_custom_call.1} parent=1 // pred_check
      _
    $region11: #{tpu_custom_call.1} parent=1 // pred_check_branch
      %57 = sbr.rel (0) target = $region13
    $region12: #{tpu_custom_call.1} parent=1 // pred_region
      %59 = vsyncadd [#allocation4], 0
      %s61 = sshll.u32 [#allocation5], 4
      %s62 = int_to_ptr.vmem [resolvable:$true] %s61
      %s63 = sshll.u32 %s1, 4
      %s64 = int_to_ptr.hbm [resolvable:$true] %s63
      %66 = dma.vmem_to_hbm [thread:$0]  %s62, 256, %s64, [#allocation4]
    $region13: #{tpu_custom_call.1} parent=1 // pred_fallthru
      _
    // Predicated region
    $region14: #{tpu_custom_call.1} parent=1 // pred_check
      _
    $region15: #{tpu_custom_call.1} parent=1 // pred_check_branch
      %68 = sbr.rel (0) target = $region17
    $region16: #{tpu_custom_call.1} parent=1 // pred_region
      %70 = dma.done [#allocation4], 256
    $region17: #{tpu_custom_call.1} parent=1 // pred_fallthru
      _
    %71 = vsyncpa [#allocation3], 1
    %72 = vsyncpa [#allocation4], 1

</llo_original>
